<compile_context>
chip_gen: v7x
topology: tpu7x:2x2x1
jax: 0.10.0
libtpu: 0.0.40
codegen_flags: <defaults>
</compile_context>

<pallas_src>
import functools

import jax
import jax.numpy as jnp
from jax.experimental import pallas as pl
from jax.experimental.pallas import tpu as pltpu


def _round_up(x, m):
    return ((x + m - 1) // m) * m


def _pick_block_rows(batch, row_vmem_bytes, max_tile_bytes=6 * 1024 * 1024):
    """Largest 8-aligned row tile whose VMEM-resident bytes stay under budget."""
    rows = max_tile_bytes // max(1, row_vmem_bytes)
    rows = int(max(8, min(rows, 8192)))
    rows = (rows // 8) * 8
    return min(rows, _round_up(batch, 8))


def _vmem_limit(tile_vmem_bytes):
    # double-buffered tile pair + headroom for fused intermediates + outputs,
    # capped well below v7x's 64 MiB physical VMEM.
    return int(min(40 * 1024 * 1024,
                   max(16 * 1024 * 1024,
                       4 * tile_vmem_bytes + 4 * 1024 * 1024)))


def _store_row_partial(out_ref, loss, *, batch, block_rows, needs_mask):
    """Reduce a (block_rows, C) loss tile over rows into the (1, C) out block.

    Tail-row masking only runs on the last grid step (and only if the batch is
    not a multiple of the row tile), so full tiles pay zero extra VALU work.
    """
    if not needs_mask:
        out_ref[...] = jnp.sum(loss, axis=0, keepdims=True)
        return

    i = pl.program_id(0)
    last = pl.num_programs(0) - 1

    @pl.when(i != last)
    def _():
        out_ref[...] = jnp.sum(loss, axis=0, keepdims=True)

    @pl.when(i == last)
    def _():
        # compare the local sublane iota against the remaining-row scalar
        rem = batch - i * block_rows
        row_ids = jax.lax.broadcasted_iota(jnp.int32, loss.shape, 0)
        out_ref[...] = jnp.sum(jnp.where(row_ids < rem, loss, 0.0),
                               axis=0, keepdims=True)


def _bce_dense_kernel(pred_ref, tgt_ref, out_ref, *, label_smoothing, nc,
                      batch, block_rows, needs_mask):
    x = pred_ref[...].astype(jnp.float32)
    t = tgt_ref[...].astype(jnp.float32)

    # label smoothing (module: y = t * (1 - ls) + ls / nc); folded when ls == 0
    if label_smoothing == 0.0:
        y = t
    else:
        y = t * (1.0 - label_smoothing) + (label_smoothing / nc)

    # numerically stable BCE-with-logits (torch BCEWithLogitsLoss, weight=None):
    #   loss = max(x, 0) - x*y + log1p(exp(-|x|))
    loss = jnp.maximum(x, 0.0) - x * y + jnp.log1p(jnp.exp(-jnp.abs(x)))
    _store_row_partial(out_ref, loss, batch=batch, block_rows=block_rows,
                       needs_mask=needs_mask)


def _bce_index_kernel(pred_ref, lbl_ref, out_ref, *, label_smoothing, nc,
                      batch, block_rows, needs_mask):
    """One-hot targets given as class indices: no dense target stream."""
    x = pred_ref[...].astype(jnp.float32)
    cls = lbl_ref[...]                                    # (block_rows, 1) int32
    col = jax.lax.broadcasted_iota(jnp.int32, x.shape, 1)
    onehot = col == cls                                   # lane-broadcast compare

    base = jnp.maximum(x, 0.0) + jnp.log1p(jnp.exp(-jnp.abs(x)))
    xsel = jnp.where(onehot, x, 0.0)                      # x * onehot without a mul
    if label_smoothing == 0.0:
        loss = base - xsel
    else:
        loss = (base - x * (label_smoothing / nc)
                - (1.0 - label_smoothing) * xsel)
    _store_row_partial(out_ref, loss, batch=batch, block_rows=block_rows,
                       needs_mask=needs_mask)


def _run(kernel, args, in_specs, num_tiles, C, block_rows, tile_vmem_bytes):
    return pl.pallas_call(
        kernel,
        out_shape=jax.ShapeDtypeStruct((num_tiles, 1, C), jnp.float32),
        grid_spec=pltpu.PrefetchScalarGridSpec(
            num_scalar_prefetch=0,
            grid=(num_tiles,),
            in_specs=in_specs,
            # leading tile dim squeezed; trailing block dims = full (1, C)
            out_specs=pl.BlockSpec((None, 1, C), lambda i: (i, 0, 0)),
        ),
        compiler_params=pltpu.CompilerParams(
            dimension_semantics=("parallel",),   # independent tiles
            vmem_limit_bytes=_vmem_limit(tile_vmem_bytes),
        ),
    )(*args)


def bce_with_logits_mean(pred, targets, label_smoothing=0.0, *, block_rows=None):
    """Mean BCE-with-logits over all elements; dense float targets (== pred shape)."""
    assert pred.shape == targets.shape and pred.ndim == 2
    B, C = pred.shape
    c_pad = _round_up(C, 128)  # lane-padded VMEM width
    row_vmem = c_pad * (pred.dtype.itemsize + targets.dtype.itemsize)

    if block_rows is None:
        block_rows = _pick_block_rows(B, row_vmem)
    assert block_rows % 8 == 0

    num_tiles = pl.cdiv(B, block_rows)
    needs_mask = (B % block_rows) != 0

    kernel = functools.partial(
        _bce_dense_kernel, label_smoothing=float(label_smoothing),
        nc=float(C), batch=B, block_rows=block_rows, needs_mask=needs_mask)

    in_specs = [pl.BlockSpec((block_rows, C), lambda i: (i, 0)),
                pl.BlockSpec((block_rows, C), lambda i: (i, 0))]
    partials = _run(kernel, (pred, targets), in_specs, num_tiles, C,
                    block_rows, block_rows * row_vmem)
    return jnp.sum(partials) / float(B * C)


def bce_with_logits_mean_index(pred, labels, label_smoothing=0.0, *,
                               block_rows=None):
    """Mean BCE-with-logits; targets given as per-row class indices (one-hot)."""
    assert pred.ndim == 2 and labels.ndim == 1 and labels.shape[0] == pred.shape[0]
    B, C = pred.shape
    labels2 = labels.astype(jnp.int32).reshape(B, 1)

    c_pad = _round_up(C, 128)
    row_vmem = c_pad * pred.dtype.itemsize + 128 * 4  # pred row + padded label row

    if block_rows is None:
        block_rows = _pick_block_rows(B, row_vmem)
    assert block_rows % 8 == 0

    num_tiles = pl.cdiv(B, block_rows)
    needs_mask = (B % block_rows) != 0

    kernel = functools.partial(
        _bce_index_kernel, label_smoothing=float(label_smoothing),
        nc=float(C), batch=B, block_rows=block_rows, needs_mask=needs_mask)

    in_specs = [pl.BlockSpec((block_rows, C), lambda i: (i, 0)),
                pl.BlockSpec((block_rows, 1), lambda i: (i, 0))]
    partials = _run(kernel, (pred, labels2), in_specs, num_tiles, C,
                    block_rows, block_rows * row_vmem)
    return jnp.sum(partials) / float(B * C)


def bce_loss(pred, targets, label_smoothing=0.0, *, block_rows=None):
    """Forward of the PyTorch `BCE` module (defaults: with-logits, mean)."""
    if targets.shape == pred.shape:
        return bce_with_logits_mean(pred, targets, label_smoothing,
                                    block_rows=block_rows)
    # module branch: integer class targets -> scatter_ one-hot (+ smoothing)
    return bce_with_logits_mean_index(pred, targets, label_smoothing,
                                      block_rows=block_rows)


if __name__ == "__main__":
    key = jax.random.PRNGKey(0)
    k1, k2 = jax.random.split(key)

    def ref_loss(pred, targets, ls=0.0):
        nc = pred.shape[-1]
        y = targets * (1.0 - ls) + ls / nc
        l = jnp.maximum(pred, 0.0) - pred * y + jnp.log1p(jnp.exp(-jnp.abs(pred)))
        return jnp.mean(l)

    # case 1: default config, dense one-hot float targets, aligned small shapes
    B, C = 16, 128
    pred = jax.random.normal(k1, (B, C), dtype=jnp.float32)
    cls = jax.random.randint(k2, (B,), 0, C)
    tgt = jax.nn.one_hot(cls, C, dtype=jnp.float32)
    out = jax.block_until_ready(bce_loss(pred, tgt))
    assert jnp.allclose(out, ref_loss(pred, tgt), rtol=1e-5, atol=1e-6), (
        out, ref_loss(pred, tgt))

    # case 2: class-index target path (half the HBM traffic), same result
    out_idx = jax.block_until_ready(bce_loss(pred, cls))
    assert jnp.allclose(out_idx, ref_loss(pred, tgt), rtol=1e-5, atol=1e-6), (
        out_idx, ref_loss(pred, tgt))

    # case 3: non-multiple-of-8 batch, non-128 class count, small forced tile so
    # the multi-tile "parallel" path + gated tail-row masking is exercised,
    # plus label smoothing (dense targets)
    B2, C2 = 13, 33
    p2 = jax.random.normal(jax.random.PRNGKey(1), (B2, C2), dtype=jnp.float32)
    t2 = jax.random.uniform(jax.random.PRNGKey(2), (B2, C2), dtype=jnp.float32)
    out2 = jax.block_until_ready(
        bce_loss(p2, t2, label_smoothing=0.1, block_rows=8))
    assert jnp.allclose(out2, ref_loss(p2, t2, 0.1), rtol=1e-5, atol=1e-6), (
        out2, ref_loss(p2, t2, 0.1))

    # case 4: index targets + label smoothing + tail masking
    c2 = jax.random.randint(jax.random.PRNGKey(3), (B2,), 0, C2)
    t2oh = jax.nn.one_hot(c2, C2, dtype=jnp.float32)
    out3 = jax.block_until_ready(
        bce_loss(p2, c2, label_smoothing=0.1, block_rows=8))
    assert jnp.allclose(out3, ref_loss(p2, t2oh, 0.1), rtol=1e-5, atol=1e-6), (
        out3, ref_loss(p2, t2oh, 0.1))

    # case 5: bf16 streaming inputs (halved HBM traffic), f32 compute inside
    out4 = jax.block_until_ready(
        bce_loss(pred.astype(jnp.bfloat16), tgt.astype(jnp.bfloat16)))
    assert jnp.allclose(out4, ref_loss(pred, tgt), rtol=2e-2, atol=2e-3), (
        out4, ref_loss(pred, tgt))

    print("KERNEL_OK")
</pallas_src>

<mosaic_0001>
module attributes {stable_mosaic.version = 11 : i64} {
  func.func @_bce_dense_kernel(%arg0: i32, %arg1: memref<16x128xf32, #tpu.memory_space<vmem>>, %arg2: memref<16x128xf32, #tpu.memory_space<vmem>>, %arg3: memref<1x1x128xf32, #tpu.memory_space<vmem>>) attributes {dimension_semantics = [#tpu.dimension_semantics<parallel>], iteration_bounds = array<i64: 1>, scalar_prefetch = 0 : i64, scratch_operands = 0 : i64, tpu.core_type = #tpu.core_type<tc>, window_params = [{transform_indices = @transform_0, window_bounds = array<i64: 16, 128>}, {transform_indices = @transform_1, window_bounds = array<i64: 16, 128>}, {transform_indices = @transform_2, window_bounds = array<i64: 1, 1, 128>}]} {
    %c0 = arith.constant 0 : index
    %c0_0 = arith.constant 0 : index
    %0 = vector.load %arg1[%c0, %c0_0] : memref<16x128xf32, #tpu.memory_space<vmem>>, vector<16x128xf32>
    %c0_1 = arith.constant 0 : index
    %c0_2 = arith.constant 0 : index
    %1 = vector.load %arg2[%c0_1, %c0_2] : memref<16x128xf32, #tpu.memory_space<vmem>>, vector<16x128xf32>
    %cst = arith.constant 0.000000e+00 : f32
    %2 = vector.broadcast %cst : f32 to vector<16x128xf32>
    %3 = arith.maximumf %0, %2 : vector<16x128xf32>
    %4 = arith.mulf %0, %1 : vector<16x128xf32>
    %5 = arith.subf %3, %4 : vector<16x128xf32>
    %6 = math.absf %0 : vector<16x128xf32>
    %cst_3 = arith.constant 0.000000e+00 : f32
    %7 = vector.broadcast %cst_3 : f32 to vector<16x128xf32>
    %8 = arith.subf %7, %6 : vector<16x128xf32>
    %9 = math.exp %8 : vector<16x128xf32>
    %10 = math.log1p %9 : vector<16x128xf32>
    %11 = arith.addf %5, %10 : vector<16x128xf32>
    %cst_4 = arith.constant dense<0.000000e+00> : vector<128xf32>
    %12 = vector.multi_reduction <add>, %11, %cst_4 [0] : vector<16x128xf32> to vector<128xf32>
    %13 = vector.shape_cast %12 : vector<128xf32> to vector<1x128xf32>
    %c0_5 = arith.constant 0 : index
    %c0_6 = arith.constant 0 : index
    %c0_7 = arith.constant 0 : index
    %14 = vector.load %arg3[%c0_5, %c0_6, %c0_7] : memref<1x1x128xf32, #tpu.memory_space<vmem>>, vector<1x1x128xf32>
    %15 = vector.shape_cast %14 : vector<1x1x128xf32> to vector<1x128xf32>
    %16 = vector.shape_cast %13 : vector<1x128xf32> to vector<1x1x128xf32>
    tpu.vector_store %arg3[%c0_5, %c0_6, %c0_7], %16 {strides = array<i32>} : memref<1x1x128xf32, #tpu.memory_space<vmem>>, vector<1x1x128xf32>,
    return
  }
  func.func @transform_0(%arg0: i32) -> (i32, i32) {
    %c0_i32 = arith.constant 0 : i32
    %c0_i32_0 = arith.constant 0 : i32
    return %arg0, %c0_i32 : i32, i32
  }
  func.func @transform_1(%arg0: i32) -> (i32, i32) {
    %c0_i32 = arith.constant 0 : i32
    %c0_i32_0 = arith.constant 0 : i32
    return %arg0, %c0_i32 : i32, i32
  }
  func.func @transform_2(%arg0: i32) -> (i32, i32, i32) {
    %c0_i32 = arith.constant 0 : i32
    %c0_i32_0 = arith.constant 0 : i32
    %c0_i32_1 = arith.constant 0 : i32
    return %arg0, %c0_i32, %c0_i32_0 : i32, i32, i32
  }
}

</mosaic_0001>

<llo_original>
// kernel: tpu_custom_call.1
$region0: #{tpu_custom_call.1}
  #allocation0 [shape = 'u32[]', space=smem, size = 0x4, offset = 0x4, fixed_abs, tag = 'smem constant byte address 0x4 - core index']
  #allocation1 [shape = 'u32[144,128]{1,0:T(1,128)}', space=vmem, size = 0x12000, scoped, tag = 'internal scratch']
  %s0 = inlined_call_operand.hbm [shape: f32[16,128], index: 0, kind: input, shape index: {}]
  %s1 = inlined_call_operand.hbm [shape: f32[16,128], index: 1, kind: input, shape index: {}]
  %s2 = inlined_call_operand.hbm [shape: f32[1,1,128], index: 2, kind: output, shape index: {}]
  %s3 = sld [smem:[#allocation0]]
  $region26: #{tpu_custom_call.1} parent=0
    _
  %s5 = ssub.s32 1, %s3
  %s6 = scalar_select 0, %s5, %s3
  $region1: #{tpu_custom_call.1} parent=0
    #allocation2 [shape = 'u8[8192]{0}', space=vmem, size = 0x2000, scoped, tag = 'input window, operand 0, single buffered']
    #allocation3 [shape = 's32[1]{0}', space=sflag, size = 0x4, scoped, tag = 'scoped memory for tpu_custom_call.1']
    #allocation4 [shape = 's32[1]{0}', space=sflag, size = 0x4, scoped, tag = 'scoped memory for tpu_custom_call.1']
    #allocation5 [shape = 'u8[8192]{0}', space=vmem, size = 0x2000, scoped, tag = 'input window, operand 1, single buffered']
    #allocation6 [shape = 's32[1]{0}', space=sflag, size = 0x4, scoped, tag = 'scoped memory for tpu_custom_call.1']
    #allocation7 [shape = 'u8[512]{0}', space=vmem, size = 0x400, scoped, tag = 'output window, operand 0, single buffered']
    %7 = vsyncpa [#allocation3], 0
    %8 = vsyncpa [#allocation6], 0
    %9 = vsyncpa [#allocation4], 0
    // Predicated region
    $region2: #{tpu_custom_call.1} parent=1 // pred_check
      _
    $region3: #{tpu_custom_call.1} parent=1 // pred_check_branch
      %11 = sbr.rel (0) target = $region5
    $region4: #{tpu_custom_call.1} parent=1 // pred_region
      %s13 = ssub.s32 256, 256
      %14 = vsyncadd [#allocation3], %s13
      %s15 = sshll.u32 [#allocation2], 4
      %s16 = int_to_ptr.vmem [resolvable:$true] %s15
      %21 = dma.hbm_to_vmem [thread:$0]  %s0, 256, %s16, [#allocation3], 128, 128, 8
    $region5: #{tpu_custom_call.1} parent=1 // pred_fallthru
      _
    // Predicated region
    $region6: #{tpu_custom_call.1} parent=1 // pred_check
      _
    $region7: #{tpu_custom_call.1} parent=1 // pred_check_branch
      %23 = sbr.rel (0) target = $region9
    $region8: #{tpu_custom_call.1} parent=1 // pred_region
      %s25 = ssub.s32 256, 256
      %26 = vsyncadd [#allocation6], %s25
      %s27 = sshll.u32 [#allocation5], 4
      %s28 = int_to_ptr.vmem [resolvable:$true] %s27
      %33 = dma.hbm_to_vmem [thread:$0]  %s1, 256, %s28, [#allocation6], 128, 128, 8
    $region9: #{tpu_custom_call.1} parent=1 // pred_fallthru
      _
    // Predicated region
    $region10: #{tpu_custom_call.1} parent=1 // pred_check
      _
    $region11: #{tpu_custom_call.1} parent=1 // pred_check_branch
      %35 = sbr.rel (0) target = $region13
    $region12: #{tpu_custom_call.1} parent=1 // pred_region
      %36 = dma.done [#allocation3], 256
    $region13: #{tpu_custom_call.1} parent=1 // pred_fallthru
      _
    // Predicated region
    $region14: #{tpu_custom_call.1} parent=1 // pred_check
      _
    $region15: #{tpu_custom_call.1} parent=1 // pred_check_branch
      %38 = sbr.rel (0) target = $region17
    $region16: #{tpu_custom_call.1} parent=1 // pred_region
      %39 = dma.done [#allocation6], 256
    $region17: #{tpu_custom_call.1} parent=1 // pred_fallthru
      _
    %v40 = vld [vmem:[#allocation2] sm:$0xff]
    %v41 = vld [vmem:[#allocation2 + $0x8] sm:$0xff]
    %v42 = vld [vmem:[#allocation5] sm:$0xff]
    %v43 = vld [vmem:[#allocation5 + $0x8] sm:$0xff]
    %v44 = vmax.f32 %v40, 0.0
    %v45 = vmax.f32 %v41, 0.0
    %v46 = vmul.f32 %v40, %v42
    %v47 = vmul.f32 %v41, %v43
    %v48 = vsub.f32 %v44, %v46
    %v49 = vsub.f32 %v45, %v47
    %v50 = vand.u32 2147483647, %v40
    %v51 = vand.u32 2147483647, %v41
    %v52 = vsub.f32 0.0, %v50
    %v53 = vsub.f32 0.0, %v51
    %v54 = vmul.f32 %v52, 1.442695
    %v55 = vpow.pop %v54
    %v56 = vmul.f32 %v53, 1.442695
    %v57 = vpow.pop %v56
    %v58 = vadd.f32 %v55, 1.0
    %v59 = vlog2.pop %v58
    %v60 = vmul.f32 %v59, 0.6931472
    %v61 = vmul.f32 -0.5, %v55
    %v62 = vadd.f32 %v61, 1.0
    %v63 = vmul.f32 %v62, %v55
    %v64 = vand.u32 2147483647, %v55
    %vm65 = vcmp.lt.f32.partialorder %v64, 0.0004427343
    %v66 = vsel %vm65, %v63, %v60
    %v67 = vadd.f32 %v57, 1.0
    %v68 = vlog2.pop %v67
    %v69 = vmul.f32 %v68, 0.6931472
    %v70 = vmul.f32 -0.5, %v57
    %v71 = vadd.f32 %v70, 1.0
    %v72 = vmul.f32 %v71, %v57
    %v73 = vand.u32 2147483647, %v57
    %vm74 = vcmp.lt.f32.partialorder %v73, 0.0004427343
    %v75 = vsel %vm74, %v72, %v69
    %v76 = vadd.f32 %v48, %v66
    %v77 = vadd.f32 %v49, %v75
    %v78 = vadd.f32 %v76, %v77
    %v79 = vrot.slane %v78, 4
    %v80 = vadd.f32 %v78, %v79
    %v81 = vrot.slane %v80, 2
    %v82 = vadd.f32 %v80, %v81
    %v83 = vrot.slane %v82, 1
    %v84 = vadd.f32 %v82, %v83
    %85 = vst [vmem:[#allocation7] sm:$0x1] %v84
    // Predicated region
    $region18: #{tpu_custom_call.1} parent=1 // pred_check
      _
    $region19: #{tpu_custom_call.1} parent=1 // pred_check_branch
      %87 = sbr.rel (0) target = $region21
    $region20: #{tpu_custom_call.1} parent=1 // pred_region
      %s89 = ssub.s32 16, 16
      %90 = vsyncadd [#allocation4], %s89
      %s92 = sshll.u32 [#allocation7], 4
      %s93 = int_to_ptr.vmem [resolvable:$true] %s92
      %95 = dma.vmem_to_hbm [thread:$0]  %s93, 16, %s2, [#allocation4]
    $region21: #{tpu_custom_call.1} parent=1 // pred_fallthru
      _
    // Predicated region
    $region22: #{tpu_custom_call.1} parent=1 // pred_check
      _
    $region23: #{tpu_custom_call.1} parent=1 // pred_check_branch
      %97 = sbr.rel (0) target = $region25
    $region24: #{tpu_custom_call.1} parent=1 // pred_region
      %98 = dma.done [#allocation4], 16
    $region25: #{tpu_custom_call.1} parent=1 // pred_fallthru
      _
    %99 = vsyncpa [#allocation3], 1
    %100 = vsyncpa [#allocation6], 1
    %101 = vsyncpa [#allocation4], 1

</llo_original>
